<compile_context>
chip_gen: v7x
topology: tpu7x:2x2x1
jax: 0.10.0
libtpu: 0.0.40
codegen_flags: <defaults>
</compile_context>

<pallas_src>
import math

import jax
import jax.numpy as jnp
from jax.experimental import pallas as pl
from jax.experimental.pallas import tpu as pltpu

_MIB = 1024 * 1024


def _scale_rows_kernel(x_ref, s_ref, o_ref):
    # Elementwise: each row (batch sample) scaled by its per-sample factor
    # (0 for dropped samples, 1/(1-p) for kept samples). Broadcast along lanes.
    o_ref[...] = x_ref[...] * s_ref[...]


def _vmem_capacity_bytes():
    try:
        info = pltpu.get_tpu_info()
        cap = getattr(info, "vmem_capacity_bytes", None)
        if cap:
            return int(cap)
    except Exception:
        pass
    return 64 * _MIB  # conservative default (v7x physical VMEM)


def _block_budget(capacity):
    # ~1/24 of physical VMEM per block: the pipelined working set is ~4 block
    # buffers (input x2, output x2) plus tiny scale tiles, leaving headroom.
    # v5e/v6e (128 MiB) -> ~5.3 MiB blocks, v7x (64 MiB) -> ~2.7 MiB blocks.
    return int(min(6 * _MIB, max(2 * _MIB, capacity // 24)))


def _plan_tiles(batch, feat, itemsize, budget):
    """Return (tb, tf, feat_padded); feat_padded == feat means no padding."""
    min_sub = max(8, 32 // max(itemsize, 1))  # 8 f32 / 16 bf16 / 32 int8

    if feat % 128 != 0:
        # Full-feature blocks are layout-legal (block dim == array dim); keep
        # the block bounded by shrinking the batch tile instead.
        row_bytes = feat * itemsize
        tb_fit = budget // max(row_bytes, 1)
        if tb_fit >= batch:
            return batch, feat, feat
        tb = (tb_fit // min_sub) * min_sub
        if tb >= min_sub:
            return int(tb), feat, feat
        # Even a minimal sublane group of full rows blows the budget (huge,
        # unaligned feature dim): pad features to a lane multiple and tile.
        feat_p = ((feat + 127) // 128) * 128
        tb, tf, _ = _plan_tiles(batch, feat_p, itemsize, budget)
        return tb, tf, feat_p

    # feat is a multiple of 128: pick the lane tile first, then grow the
    # sublane tile into the remaining budget.
    tf = min(feat, max(128, (budget // max(min_sub * itemsize, 1)) // 128 * 128))
    tb_fit = budget // max(tf * itemsize, 1)
    if tb_fit >= batch:
        tb = batch
    else:
        tb = max(min_sub, (tb_fit // min_sub) * min_sub)
    return int(tb), int(tf), feat


def _split_for_two_cores(batch, feat, tb, tf):
    # v7x has 2 TensorCores; a (1, 1) grid leaves one (and its share of HBM BW)
    # idle. Split the feature axis (preferred: stays lane-dense) or batch axis
    # into >= 2 parallel blocks. Neutral on v5e/v6e (one extra ~0.35 us step).
    if pl.cdiv(batch, tb) * pl.cdiv(feat, tf) > 1:
        return tb, tf
    if feat % 128 == 0 and feat >= 256:
        tf = ((feat // 2 + 127) // 128) * 128
    elif batch >= 16:
        tb = ((batch + 1) // 2 + 7) // 8 * 8
    return tb, tf


def stochastic_depth(x, p, training, key=None, *, force_pallas=False, donate_x=False):
    """Pallas TPU implementation of torch-style per-sample stochastic depth."""
    assert 0.0 <= p <= 1.0, f"p should be in the range of [0, 1] but found {p}"
    if p == 0.0 or not training:
        return x

    survival_rate = 1.0 - p
    if survival_rate == 0.0:
        # Every sample dropped; reference multiplies by an all-zero mask.
        return jnp.zeros_like(x)

    if key is None:
        # TODO(synk): PyTorch draws fresh noise from a global RNG each forward;
        # callers should pass a fresh key (the module below splits one per call).
        key = jax.random.PRNGKey(0)

    batch = x.shape[0]
    feat = int(math.prod(x.shape[1:])) if x.ndim > 1 else 1
    x2 = x.reshape(batch, feat)

    # Per-sample keep mask / scale, computed once outside the kernel (O(B)).
    mask = jax.random.bernoulli(key, survival_rate, (batch,))
    scale = (mask.astype(jnp.float32) / survival_rate).astype(x.dtype)
    scale2 = scale.reshape(batch, 1)

    itemsize = jnp.dtype(x.dtype).itemsize
    total_bytes = batch * feat * itemsize

    # Small or lane-starved inputs: XLA's fused broadcast-multiply already hits
    # the HBM roofline; pallas_call launch overhead / masked <128-lane stores
    # would only hurt.
    if not force_pallas and (total_bytes < 1 * _MIB or feat < 128):
        return (x2 * scale2).reshape(x.shape)

    capacity = _vmem_capacity_bytes()
    budget = _block_budget(capacity)
    tb, tf, feat_p = _plan_tiles(batch, feat, itemsize, budget)
    tb, tf = _split_for_two_cores(batch, feat_p, tb, tf)

    x_in = x2 if feat_p == feat else jnp.pad(x2, ((0, 0), (0, feat_p - feat)))

    block_bytes = tb * tf * itemsize
    vmem_limit = int(min(capacity // 2, max(16 * _MIB, 4 * block_bytes + 2 * _MIB)))

    io_aliases = {0: 0} if (donate_x and feat_p == feat) else {}

    out = pl.pallas_call(
        _scale_rows_kernel,
        out_shape=jax.ShapeDtypeStruct((batch, feat_p), x.dtype),
        grid_spec=pltpu.PrefetchScalarGridSpec(
            num_scalar_prefetch=0,
            # feature axis trailing (fastest-varying): the scale tile's block
            # index (i, 0) stays constant across consecutive steps.
            grid=(pl.cdiv(batch, tb), pl.cdiv(feat_p, tf)),
            in_specs=[
                pl.BlockSpec((tb, tf), lambda i, j: (i, j)),
                pl.BlockSpec((tb, 1), lambda i, j: (i, 0)),
            ],
            out_specs=pl.BlockSpec((tb, tf), lambda i, j: (i, j)),
        ),
        compiler_params=pltpu.CompilerParams(
            dimension_semantics=("parallel", "parallel"),
            vmem_limit_bytes=vmem_limit,
        ),
        input_output_aliases=io_aliases,
    )(x_in, scale2)

    if feat_p != feat:
        out = out[:, :feat]
    return out.reshape(x.shape)


class StochasticDepth:
    """JAX/Pallas port of the PyTorch StochasticDepth module."""

    def __init__(self, p, key=None):
        self.p = p
        self.training = True
        self._key = key if key is not None else jax.random.PRNGKey(0)

    def __call__(self, inputs, key=None, **kwargs):
        if key is None:
            # Fresh per-call noise, mirroring torch's global RNG behaviour.
            self._key, key = jax.random.split(self._key)
        return stochastic_depth(inputs, self.p, self.training, key=key, **kwargs)

    def __repr__(self):
        return f"p={self.p}"


if __name__ == "__main__":
    root = jax.random.PRNGKey(0)
    xkey, dkey = jax.random.split(root)

    # NCHW input, consistent with the PyTorch module's typical use.
    x = jax.random.normal(xkey, (2, 4, 16, 16), dtype=jnp.float32)
    p = 0.5

    module = StochasticDepth(p=p)
    # force_pallas so the small demo shape exercises the Pallas path
    # (production-sized inputs take it automatically).
    y = jax.block_until_ready(module(x, key=dkey, force_pallas=True))
    assert y.shape == x.shape and y.dtype == x.dtype

    # Reference: same per-sample mask drawn with the same key, plain JAX.
    ref_mask = jax.random.bernoulli(dkey, 1.0 - p, (x.shape[0],))
    ref_scale = (ref_mask.astype(jnp.float32) / (1.0 - p)).astype(x.dtype)
    y_ref = x * ref_scale.reshape(-1, 1, 1, 1)
    assert bool(jnp.allclose(y, y_ref)), "kernel output mismatch vs reference"

    # Each sample must be either all-zero or exactly x / (1 - p).
    for b in range(x.shape[0]):
        zeroed = bool(jnp.all(y[b] == 0))
        scaled = bool(jnp.allclose(y[b], x[b] / (1.0 - p)))
        assert zeroed or scaled

    # Non-128-aligned feature path through Pallas (bounded-block fix).
    x3 = jax.random.normal(xkey, (4, 3, 10, 10), dtype=jnp.float32)  # feat = 300
    k3 = jax.random.PRNGKey(7)
    y3 = jax.block_until_ready(
        stochastic_depth(x3, 0.25, True, key=k3, force_pallas=True))
    m3 = (jax.random.bernoulli(k3, 0.75, (4,)).astype(jnp.float32) / 0.75).astype(x3.dtype)
    assert bool(jnp.allclose(y3, x3 * m3.reshape(-1, 1, 1, 1)))

    # Small-input fallback path (plain JAX) agrees with the reference.
    y_small = jax.block_until_ready(stochastic_depth(x, p, True, key=dkey))
    assert bool(jnp.allclose(y_small, y_ref))

    # Fresh noise per call when no key is passed (internal key splitting).
    _ = jax.block_until_ready(module(x))
    _ = jax.block_until_ready(module(x))

    # Identity path (training=False).
    module.training = False
    y_eval = jax.block_until_ready(module(x))
    assert bool(jnp.array_equal(y_eval, x))

    # p == 0 path.
    module.training = True
    module.p = 0.0
    y_p0 = jax.block_until_ready(module(x, key=dkey))
    assert bool(jnp.array_equal(y_p0, x))

    print("KERNEL_OK")
</pallas_src>

<mosaic_0001>
module attributes {stable_mosaic.version = 11 : i64} {
  func.func @_scale_rows_kernel(%arg0: i32, %arg1: i32, %arg2: memref<2x512xf32, #tpu.memory_space<vmem>>, %arg3: memref<2x1xf32, #tpu.memory_space<vmem>>, %arg4: memref<2x512xf32, #tpu.memory_space<vmem>>) attributes {dimension_semantics = [#tpu.dimension_semantics<parallel>, #tpu.dimension_semantics<parallel>], iteration_bounds = array<i64: 1, 2>, scalar_prefetch = 0 : i64, scratch_operands = 0 : i64, tpu.core_type = #tpu.core_type<tc>, window_params = [{transform_indices = @transform_0, window_bounds = array<i64: 2, 512>}, {transform_indices = @transform_1, window_bounds = array<i64: 2, 1>}, {transform_indices = @transform_2, window_bounds = array<i64: 2, 512>}]} {
    %c0 = arith.constant 0 : index
    %c0_0 = arith.constant 0 : index
    %0 = vector.load %arg2[%c0, %c0_0] : memref<2x512xf32, #tpu.memory_space<vmem>>, vector<2x512xf32>
    %c0_1 = arith.constant 0 : index
    %c0_2 = arith.constant 0 : index
    %1 = vector.load %arg3[%c0_1, %c0_2] : memref<2x1xf32, #tpu.memory_space<vmem>>, vector<2x1xf32>
    %2 = vector.broadcast %1 : vector<2x1xf32> to vector<2x512xf32>
    %3 = arith.mulf %0, %2 : vector<2x512xf32>
    %c0_3 = arith.constant 0 : index
    %c0_4 = arith.constant 0 : index
    %4 = vector.load %arg4[%c0_3, %c0_4] : memref<2x512xf32, #tpu.memory_space<vmem>>, vector<2x512xf32>
    tpu.vector_store %arg4[%c0_3, %c0_4], %3 {strides = array<i32>} : memref<2x512xf32, #tpu.memory_space<vmem>>, vector<2x512xf32>,
    return
  }
  func.func @transform_0(%arg0: i32, %arg1: i32) -> (i32, i32) {
    %c0_i32 = arith.constant 0 : i32
    return %arg0, %arg1 : i32, i32
  }
  func.func @transform_1(%arg0: i32, %arg1: i32) -> (i32, i32) {
    %c0_i32 = arith.constant 0 : i32
    %c0_i32_0 = arith.constant 0 : i32
    return %arg0, %c0_i32 : i32, i32
  }
  func.func @transform_2(%arg0: i32, %arg1: i32) -> (i32, i32) {
    %c0_i32 = arith.constant 0 : i32
    return %arg0, %arg1 : i32, i32
  }
}

</mosaic_0001>

<llo_original>
// kernel: tpu_custom_call.1
$region0: #{tpu_custom_call.1}
  #allocation0 [shape = 'u32[]', space=smem, size = 0x4, offset = 0x4, fixed_abs, tag = 'smem constant byte address 0x4 - core index']
  #allocation1 [shape = 'u32[144,128]{1,0:T(1,128)}', space=vmem, size = 0x12000, scoped, tag = 'internal scratch']
  %s0 = inlined_call_operand.hbm [shape: f32[2,1024], index: 0, kind: input, shape index: {}]
  %s1 = inlined_call_operand.vmem [shape: f32[2,1], index: 1, kind: input, shape index: {}]
  %s2 = inlined_call_operand.hbm [shape: f32[2,1024], index: 2, kind: output, shape index: {}]
  %s3 = sld [smem:[#allocation0]]
  $region45: #{tpu_custom_call.1} parent=0
    _
  %s5 = ssub.s32 1, %s3
  %s6 = scalar_select 0, %s5, %s3
  $region1: #{tpu_custom_call.1} parent=0
    #allocation2 [shape = 'u8[8192]{0}', space=vmem, size = 0x2000, scoped, tag = 'input window, operand 0']
    #allocation3 [shape = 's32[2]{0}', space=sflag, size = 0x8, scoped, tag = 'scoped memory for tpu_custom_call.1']
    #allocation4 [shape = 's32[2]{0}', space=sflag, size = 0x8, scoped, tag = 'scoped memory for tpu_custom_call.1']
    #allocation5 [shape = 'u8[8192]{0}', space=vmem, size = 0x2000, scoped, tag = 'output window, operand 0']
    %7 = vsyncpa [#allocation3], 0
    %s8 = scalar_lea.sflag [#allocation3], 1
    %9 = vsyncpa %s8, 0
    %10 = vsyncpa [#allocation4], 0
    %s11 = scalar_lea.sflag [#allocation4], 1
    %12 = vsyncpa %s11, 0
    loop: start=0, step=1, limit=4
    $region2: #{tpu_custom_call.1} parent=1 // loop_pre_header
      _
    $region3: #{tpu_custom_call.1} parent=1 // loop_header
      %s14 = sphi 0, %s18
      %p15 = scmp.ge.s32.totalorder %s14, 4
      %s21 = sphi 0, %s33
      %s22 = sphi 0, %s29
      %s23 = sphi 0, %s21
      %s24 = sphi 0, %s22
      %s25 = sphi 0, %s23
      %s26 = sphi 0, %s24
      %s38 = sphi 0, %s40
      %s41 = sphi 0, %s38
      %s42 = sphi 0, %s41
      %s58 = sphi 0, %s42
      %s64 = sphi 0, %s66
      %s67 = sphi 0, %s64
      %s68 = sphi 0, %s67
      %s84 = sphi 0, %s68
      %s92 = sphi 0, %s94
      %s95 = sphi 0, %s92
      %s96 = sphi 0, %s95
      %s112 = sphi 0, %s96
    $region4: #{tpu_custom_call.1} parent=1 // loop_header_branch
      %17 = sbr.rel (%p15) target = $region8
    $region5: #{tpu_custom_call.1} parent=1 // loop_body
      %s19 = ssub.s32 %s14, 1
      %s20 = ssub.s32 %s14, 2
      %s27 = sadd.s32 1, %s22
      %p28 = scmp.ge.s32.totalorder %s27, 2
      %s29 = scalar_select %p28, 0, %s27
      %s30 = sadd.s32 1, %s21
      %s31 = scalar_select %p28, %s30, %s21
      %p32 = scmp.ge.s32.totalorder %s31, 1
      %s33 = scalar_select %p32, 0, %s31
      %s34 = ssub.s32 %s21, %s33
      %s35 = ssub.s32 %s22, %s29
      %s36 = sor.u32 %s34, %s35
      %p37 = scmp.eq.s32.totalorder %s36, 0
      %s39 = sadd.s32 %s38, 1
      %s40 = scalar_select %p37, %s38, %s39
      %p43 = pneg %p37
      %p44 = scmp.eq.s32.totalorder %s14, 1
      %p45 = por %p43, %p44
      %p46 = scmp.ne.s32.totalorder %s38, %s41
      %p47 = scmp.eq.s32.totalorder %s14, 0
      %p48 = por %p46, %p47
      %p49 = scmp.ne.s32.totalorder %s38, %s41
      %p50 = scmp.eq.s32.totalorder %s19, 1
      %p51 = por %p49, %p50
      %p52 = scmp.ne.s32.totalorder %s41, %s42
      %p53 = scmp.eq.s32.totalorder %s19, 0
      %p54 = por %p52, %p53
      %p55 = scmp.ne.s32.totalorder %s41, %s42
      %p56 = scmp.eq.s32.totalorder %s20, 1
      %p57 = por %p55, %p56
      %p59 = scmp.ne.s32.totalorder %s42, %s58
      %p60 = scmp.eq.s32.totalorder %s20, 0
      %p61 = por %p59, %p60
      %s62 = ssub.s32 %s21, %s33
      %p63 = scmp.eq.s32.totalorder %s62, 0
      %s65 = sadd.s32 %s64, 1
      %s66 = scalar_select %p63, %s64, %s65
      %p69 = pneg %p63
      %p70 = scmp.eq.s32.totalorder %s14, 1
      %p71 = por %p69, %p70
      %p72 = scmp.ne.s32.totalorder %s64, %s67
      %p73 = scmp.eq.s32.totalorder %s14, 0
      %p74 = por %p72, %p73
      %p75 = scmp.ne.s32.totalorder %s64, %s67
      %p76 = scmp.eq.s32.totalorder %s19, 1
      %p77 = por %p75, %p76
      %p78 = scmp.ne.s32.totalorder %s67, %s68
      %p79 = scmp.eq.s32.totalorder %s19, 0
      %p80 = por %p78, %p79
      %p81 = scmp.ne.s32.totalorder %s67, %s68
      %p82 = scmp.eq.s32.totalorder %s20, 1
      %p83 = por %p81, %p82
      %p85 = scmp.ne.s32.totalorder %s68, %s84
      %p86 = scmp.eq.s32.totalorder %s20, 0
      %p87 = por %p85, %p86
      %s88 = ssub.s32 %s21, %s33
      %s89 = ssub.s32 %s22, %s29
      %s90 = sor.u32 %s88, %s89
      %p91 = scmp.eq.s32.totalorder %s90, 0
      %s93 = sadd.s32 %s92, 1
      %s94 = scalar_select %p91, %s92, %s93
      %p97 = pneg %p91
      %p98 = scmp.eq.s32.totalorder %s14, 1
      %p99 = por %p97, %p98
      %p100 = scmp.ne.s32.totalorder %s92, %s95
      %p101 = scmp.eq.s32.totalorder %s14, 0
      %p102 = por %p100, %p101
      %p103 = scmp.ne.s32.totalorder %s92, %s95
      %p104 = scmp.eq.s32.totalorder %s19, 1
      %p105 = por %p103, %p104
      %p106 = scmp.ne.s32.totalorder %s95, %s96
      %p107 = scmp.eq.s32.totalorder %s19, 0
      %p108 = por %p106, %p107
      %p109 = scmp.ne.s32.totalorder %s95, %s96
      %p110 = scmp.eq.s32.totalorder %s20, 1
      %p111 = por %p109, %p110
      %p113 = scmp.ne.s32.totalorder %s96, %s112
      %p114 = scmp.eq.s32.totalorder %s20, 0
      %p115 = por %p113, %p114
      %p116 = scmp.le.s32.totalorder 1, %s14
      %p117 = scmp.lt.s32.totalorder %s14, 3
      %p118 = pnand %p116, %p117
      %p119 = pneg %p118
      // Predicated region
      $region9: #{tpu_custom_call.1} parent=5 // pred_check
        _
      $region10: #{tpu_custom_call.1} parent=5 // pred_check_branch
        %121 = sbr.rel (%p118) target = $region12
      $region11: #{tpu_custom_call.1} parent=5 // pred_region
        %s122 = ssub.s32 %s14, 1
        // Predicated region
        $region13: #{tpu_custom_call.1} parent=11 // pred_check
          %p123 = pneg %p80
        $region14: #{tpu_custom_call.1} parent=11 // pred_check_branch
          %125 = sbr.rel (%p123) target = $region16
        $region15: #{tpu_custom_call.1} parent=11 // pred_region
          %p126 = scmp.lt.s32.totalorder %s23, 0
          %s127 = scalar_select %p126, %s23, 0
          %s128 = smul.addr %s127, 2
          %s129 = scalar_lea.vmem %s1, %s128
        $region16: #{tpu_custom_call.1} parent=11 // pred_fallthru
          _
      $region12: #{tpu_custom_call.1} parent=5 // pred_fallthru
        _
      %p130 = scmp.lt.s32.totalorder %s14, 2
      // Predicated region
      $region17: #{tpu_custom_call.1} parent=5 // pred_check
        %p131 = pneg %p130
      $region18: #{tpu_custom_call.1} parent=5 // pred_check_branch
        %133 = sbr.rel (%p131) target = $region20
      $region19: #{tpu_custom_call.1} parent=5 // pred_region
        // Predicated region
        $region21: #{tpu_custom_call.1} parent=19 // pred_check
          %p134 = pneg %p48
        $region22: #{tpu_custom_call.1} parent=19 // pred_check_branch
          %136 = sbr.rel (%p134) target = $region24
        $region23: #{tpu_custom_call.1} parent=19 // pred_region
          %s137 = sand.u32 %s38, 1
          %s138 = scalar_lea.sflag [#allocation3], %s137
          %s139 = sand.u32 %s38, 1
          %s140 = smul.addr %s139, 8
          %s141 = scalar_lea.vmem [#allocation2], %s140
          %s142 = smul.u32 4, %s22
          %s144 = ssub.s32 128, 128
          %145 = vsyncadd %s138, %s144
          %s146 = smul.addr %s21, 8
          %s147 = sadd.s32 %s142, %s146
          %s148 = smul.addr %s147, 32
          %s149 = scalar_lea.hbm %s0, %s148
          %s151 = sshll.u32 %s141, 4
          %s152 = int_to_ptr.vmem [resolvable:$true] %s151
          %154 = dma.hbm_to_vmem [thread:$0]  %s149, 128, %s152, %s138
        $region24: #{tpu_custom_call.1} parent=19 // pred_fallthru
          _
      $region20: #{tpu_custom_call.1} parent=5 // pred_fallthru
        _
      %p155 = scmp.le.s32.totalorder 1, %s14
      %p156 = scmp.lt.s32.totalorder %s14, 3
      %p157 = pnand %p155, %p156
      %p158 = pneg %p157
      // Predicated region
      $region25: #{tpu_custom_call.1} parent=5 // pred_check
        _
      $region26: #{tpu_custom_call.1} parent=5 // pred_check_branch
        %160 = sbr.rel (%p157) target = $region28
      $region27: #{tpu_custom_call.1} parent=5 // pred_region
        %s161 = ssub.s32 %s14, 1
        %s162 = sand.u32 %s41, 1
        %s163 = scalar_lea.sflag [#allocation3], %s162
        %s164 = sand.u32 %s41, 1
        %s165 = smul.addr %s164, 8
        %s166 = scalar_lea.vmem [#allocation2], %s165
        // Predicated region
        $region29: #{tpu_custom_call.1} parent=27 // pred_check
          %p167 = pneg %p54
        $region30: #{tpu_custom_call.1} parent=27 // pred_check_branch
          %169 = sbr.rel (%p167) target = $region32
        $region31: #{tpu_custom_call.1} parent=27 // pred_region
          %170 = dma.done %s163, 128
        $region32: #{tpu_custom_call.1} parent=27 // pred_fallthru
          _
        %s171 = sand.u32 %s41, 1
        %s172 = scalar_lea.sflag [#allocation3], %s171
        %s173 = sand.u32 %s41, 1
        %s174 = smul.addr %s173, 8
        %s175 = scalar_lea.vmem [#allocation2], %s174
        %p176 = pneg %p54
        %p177 = pneg %p51
        %p178 = scmp.lt.s32.totalorder %s23, 0
        %s179 = scalar_select %p178, %s23, 0
        %s180 = smul.addr %s179, 2
        %s181 = scalar_lea.vmem %s1, %s180
        %p182 = pneg %p80
        %p183 = pneg %p77
        %p184 = pneg %p108
        %p185 = pneg %p105
        %s186 = sand.u32 %s95, 1
        %s187 = scalar_lea.sflag [#allocation4], %s186
        %s188 = sand.u32 %s95, 1
        %s189 = smul.addr %s188, 8
        %s190 = scalar_lea.vmem [#allocation5], %s189
        %s191 = smul.u32 4, %s24
        %p192 = scmp.lt.s32.totalorder %s23, 0
        %s193 = scalar_select %p192, %s23, 0
        %s194 = smul.addr %s193, 2
        %s195 = scalar_lea.vmem %s1, %s194
        %s196 = smul.u32 4, %s24
        %v197 = vld [vmem:[%s166] sm:$0xff]
        %v198 = vld [vmem:[%s195] sm:$0x3]
        %200 = vset.pattern.permute.xlu0 0
        %201 = vperm.xlu0 %200, %v198
        %v202 = vpop.permute.xlu0 %201
        %v204 = vunpack.c.l.s4 269488144
        %v205 = vunpack.c.0.s8 %v204
        %v206 = vlaneseq
        %v207 = vshrl.u32 %v206, 7
        %v208 = vsub.s32 %v205, %v207
        %v209 = vrot.slane %v202, %v208
        %v211 = vmul.f32 %v197, %v209
        %212 = vst [vmem:[%s190] sm:$0xff] %v211
        %s213 = sand.u32 %s95, 1
        %s214 = scalar_lea.sflag [#allocation4], %s213
        %s215 = sand.u32 %s95, 1
        %s216 = smul.addr %s215, 8
        %s217 = scalar_lea.vmem [#allocation5], %s216
        // Predicated region
        $region33: #{tpu_custom_call.1} parent=27 // pred_check
          %p218 = pneg %p105
        $region34: #{tpu_custom_call.1} parent=27 // pred_check_branch
          %220 = sbr.rel (%p218) target = $region36
        $region35: #{tpu_custom_call.1} parent=27 // pred_region
          %s221 = smul.u32 4, %s24
          %s223 = ssub.s32 128, 128
          %224 = vsyncadd %s214, %s223
          %s225 = smul.addr %s23, 8
          %s226 = sadd.s32 %s221, %s225
          %s227 = smul.addr %s226, 32
          %s228 = scalar_lea.hbm %s2, %s227
          %s230 = sshll.u32 %s217, 4
          %s231 = int_to_ptr.vmem [resolvable:$true] %s230
          %233 = dma.vmem_to_hbm [thread:$0]  %s231, 128, %s228, %s214
        $region36: #{tpu_custom_call.1} parent=27 // pred_fallthru
          _
      $region28: #{tpu_custom_call.1} parent=5 // pred_fallthru
        _
      %p234 = scmp.le.s32.totalorder 2, %s14
      // Predicated region
      $region37: #{tpu_custom_call.1} parent=5 // pred_check
        %p235 = pneg %p234
      $region38: #{tpu_custom_call.1} parent=5 // pred_check_branch
        %237 = sbr.rel (%p235) target = $region40
      $region39: #{tpu_custom_call.1} parent=5 // pred_region
        %s238 = ssub.s32 %s14, 2
        // Predicated region
        $region41: #{tpu_custom_call.1} parent=39 // pred_check
          %p239 = pneg %p111
        $region42: #{tpu_custom_call.1} parent=39 // pred_check_branch
          %241 = sbr.rel (%p239) target = $region44
        $region43: #{tpu_custom_call.1} parent=39 // pred_region
          %s242 = sand.u32 %s96, 1
          %s243 = scalar_lea.sflag [#allocation4], %s242
          %s244 = sand.u32 %s96, 1
          %s245 = smul.addr %s244, 8
          %s246 = scalar_lea.vmem [#allocation5], %s245
          %247 = dma.done %s243, 128
        $region44: #{tpu_custom_call.1} parent=39 // pred_fallthru
          _
      $region40: #{tpu_custom_call.1} parent=5 // pred_fallthru
        _
    $region6: #{tpu_custom_call.1} parent=1 // loop_footer
      %s18 = sadd.s32 1, %s14
    $region7: #{tpu_custom_call.1} parent=1 // loop_footer_branch
      %13 = sbr.rel target = $region3
    $region8: #{tpu_custom_call.1} parent=1 // loop_exit
      _
    %248 = vsyncpa [#allocation3], 1
    %s249 = scalar_lea.sflag [#allocation3], 1
    %250 = vsyncpa %s249, 1
    %251 = vsyncpa [#allocation4], 1
    %s252 = scalar_lea.sflag [#allocation4], 1
    %253 = vsyncpa %s252, 1

</llo_original>
